<compile_context>
chip_gen: v7x
topology: tpu7x:2x2x1
jax: 0.10.0
libtpu: 0.0.40
codegen_flags: <defaults>
</compile_context>

<pallas_src>
import jax
import jax.numpy as jnp
from jax.experimental import pallas as pl
from jax.experimental.pallas import tpu as pltpu

LANES = 128             # vreg lane width
MAX_BLOCK_ROWS = 2048   # f32: 2048*128*4 = 1 MiB/tile; 2x(in+out) = 4 MiB double-buffered


def _round_up(a, b):
    return ((a + b - 1) // b) * b


def _affine_kernel(w_ref, b_ref, x_ref, o_ref):
    # w_ref, b_ref : SMEM scalars, shape (1,)
    # x_ref, o_ref : VMEM tiles, shape (block_rows, 128)
    w = w_ref[0]
    b = b_ref[0]
    # f32 compute on the VPU (v5e has no bf16 VPU path), downcast on store.
    o_ref[...] = (x_ref[...].astype(jnp.float32) * w + b).astype(o_ref.dtype)


def linear_pallas(x, weight, bias, *, min_pallas_elems=1 << 17, donate_slab=False):
    """y = x @ weight.T + bias with weight (1,1), bias (1,), x (..., 1)."""
    assert x.shape[-1] == 1 and weight.shape == (1, 1) and bias.shape == (1,)
    n = x.size
    orig_shape = x.shape

    w = weight.reshape(-1).astype(jnp.float32)  # (1,)
    b = bias.reshape(-1).astype(jnp.float32)    # (1,)

    # Small / medium batches: a single fused XLA affine pass already matches the
    # minimal HBM traffic (one read + one write); Pallas launch + relayout would
    # only add overhead.
    if n < min_pallas_elems:
        return (x.astype(jnp.float32) * w[0] + b[0]).astype(x.dtype)

    itemsize = jnp.dtype(x.dtype).itemsize
    sublane = 32 // itemsize                     # 8 (f32) / 16 (bf16) / 32 (i8, fp8)

    # ---- lane-dense view: (rows, 128). Pad at most one 128-lane row. ----
    rows = pl.cdiv(n, LANES)
    aligned = (n % LANES == 0)
    x_flat = x.reshape(-1)
    if not aligned:
        x_flat = jnp.pad(x_flat, (0, rows * LANES - n))
    x2d = x_flat.reshape(rows, LANES)

    # ---- block sizing ----
    if rows <= sublane:
        # Single full-extent block (block dim == array dim is always legal).
        block_rows = rows
    else:
        # Aim for >= 2 blocks so v7x's two TensorCores can both stream,
        # capped at MAX_BLOCK_ROWS and rounded to the native sublane tile.
        block_rows = min(MAX_BLOCK_ROWS, _round_up(pl.cdiv(rows, 2), sublane))
        num_blocks = pl.cdiv(rows, block_rows)
        # Rebalance so the ragged last block is not pathologically small.
        block_rows = min(MAX_BLOCK_ROWS, _round_up(pl.cdiv(rows, num_blocks), sublane))
    num_blocks = pl.cdiv(rows, block_rows)       # last block may be ragged; Pallas masks it

    cost = pl.CostEstimate(
        flops=2 * n,                              # one mul + one add per element
        transcendentals=0,
        bytes_accessed=2 * rows * LANES * itemsize,  # actual slab read + write
    )

    io_alias = {2: 0} if donate_slab else {}      # reuse x2d's buffer for y2d (optional)

    y2d = pl.pallas_call(
        _affine_kernel,
        out_shape=jax.ShapeDtypeStruct((rows, LANES), x.dtype),
        grid=(num_blocks,),
        in_specs=[
            pl.BlockSpec(memory_space=pltpu.MemorySpace.SMEM),      # weight scalar
            pl.BlockSpec(memory_space=pltpu.MemorySpace.SMEM),      # bias scalar
            pl.BlockSpec((block_rows, LANES), lambda i: (i, 0)),    # x tile
        ],
        out_specs=pl.BlockSpec((block_rows, LANES), lambda i: (i, 0)),
        compiler_params=pltpu.CompilerParams(
            dimension_semantics=("parallel",),    # independent rows -> megacore shard
            vmem_limit_bytes=32 * 1024 * 1024,    # safe on v5e/v6e/v7x; ~8x headroom here
        ),
        cost_estimate=cost,
        input_output_aliases=io_alias,
    )(w, b, x2d)

    if aligned:
        return y2d.reshape(orig_shape)            # pure reshape, no extra HBM pass
    return y2d.reshape(-1)[:n].reshape(orig_shape)


if __name__ == "__main__":
    key = jax.random.PRNGKey(0)
    k_x, k_w, k_b = jax.random.split(key, 3)

    # Deterministic "parameter init" mimicking nn.Linear(1, 1)
    # (PyTorch uses U(-1/sqrt(fan_in), 1/sqrt(fan_in)) with fan_in = 1).
    weight = jax.random.uniform(k_w, (1, 1), jnp.float32, -1.0, 1.0)
    bias = jax.random.uniform(k_b, (1,), jnp.float32, -1.0, 1.0)

    # 1) 128-lane-aligned batch: Pallas streaming path, no pad / no tail slice.
    n = 8192
    x = jax.random.normal(k_x, (n, 1), jnp.float32)
    y = linear_pallas(x, weight, bias, min_pallas_elems=0)  # force the Pallas path
    jax.block_until_ready(y)
    y_ref = x @ weight.T + bias
    assert y.shape == (n, 1)
    assert jnp.allclose(y, y_ref, atol=1e-6), "mismatch (aligned pallas path)"

    # 2) Unaligned batch: one-row pad + ragged last block + tail slice.
    n2 = 8192 + 37
    x2 = jax.random.normal(k_x, (n2, 1), jnp.float32)
    y2 = linear_pallas(x2, weight, bias, min_pallas_elems=0)
    jax.block_until_ready(y2)
    assert y2.shape == (n2, 1)
    assert jnp.allclose(y2, x2 @ weight.T + bias, atol=1e-6), "mismatch (ragged pallas path)"

    # 3) Small batch: default threshold -> single-pass XLA fusion bypass.
    x3 = jax.random.normal(k_x, (8, 1), jnp.float32)
    y3 = linear_pallas(x3, weight, bias)
    jax.block_until_ready(y3)
    assert jnp.allclose(y3, x3 @ weight.T + bias, atol=1e-6), "mismatch (small-batch path)"

    print("KERNEL_OK")
</pallas_src>

<mosaic_0001>
module attributes {stable_mosaic.version = 11 : i64} {
  func.func @_affine_kernel(%arg0: i32, %arg1: memref<1xf32, #tpu.memory_space<smem>>, %arg2: memref<1xf32, #tpu.memory_space<smem>>, %arg3: memref<32x128xf32, #tpu.memory_space<vmem>>, %arg4: memref<32x128xf32, #tpu.memory_space<vmem>>) attributes {dimension_semantics = [#tpu.dimension_semantics<parallel>], iteration_bounds = array<i64: 2>, scalar_prefetch = 0 : i64, scratch_operands = 0 : i64, tpu.core_type = #tpu.core_type<tc>, window_params = [{transform_indices = @transform_0, window_bounds = array<i64: 1>}, {transform_indices = @transform_1, window_bounds = array<i64: 1>}, {transform_indices = @transform_2, window_bounds = array<i64: 32, 128>}, {transform_indices = @transform_3, window_bounds = array<i64: 32, 128>}]} {
    %c0 = arith.constant 0 : index
    %0 = memref.load %arg1[%c0] : memref<1xf32, #tpu.memory_space<smem>>
    %c0_0 = arith.constant 0 : index
    %1 = memref.load %arg2[%c0_0] : memref<1xf32, #tpu.memory_space<smem>>
    %c0_1 = arith.constant 0 : index
    %c0_2 = arith.constant 0 : index
    %2 = vector.load %arg3[%c0_1, %c0_2] : memref<32x128xf32, #tpu.memory_space<vmem>>, vector<32x128xf32>
    %3 = vector.broadcast %0 : f32 to vector<32x128xf32>
    %4 = arith.mulf %2, %3 : vector<32x128xf32>
    %5 = vector.broadcast %1 : f32 to vector<32x128xf32>
    %6 = arith.addf %4, %5 : vector<32x128xf32>
    %c0_3 = arith.constant 0 : index
    %c0_4 = arith.constant 0 : index
    %7 = vector.load %arg4[%c0_3, %c0_4] : memref<32x128xf32, #tpu.memory_space<vmem>>, vector<32x128xf32>
    tpu.vector_store %arg4[%c0_3, %c0_4], %6 {strides = array<i32>} : memref<32x128xf32, #tpu.memory_space<vmem>>, vector<32x128xf32>,
    return
  }
  func.func @transform_0(%arg0: i32) -> i32 {
    %c0_i32 = arith.constant 0 : i32
    %c0_i32_0 = arith.constant 0 : i32
    return %c0_i32 : i32
  }
  func.func @transform_1(%arg0: i32) -> i32 {
    %c0_i32 = arith.constant 0 : i32
    %c0_i32_0 = arith.constant 0 : i32
    return %c0_i32 : i32
  }
  func.func @transform_2(%arg0: i32) -> (i32, i32) {
    %c0_i32 = arith.constant 0 : i32
    %c0_i32_0 = arith.constant 0 : i32
    return %arg0, %c0_i32 : i32, i32
  }
  func.func @transform_3(%arg0: i32) -> (i32, i32) {
    %c0_i32 = arith.constant 0 : i32
    %c0_i32_0 = arith.constant 0 : i32
    return %arg0, %c0_i32 : i32, i32
  }
}

</mosaic_0001>

<llo_original>
// kernel: tpu_custom_call.1
$region0: #{tpu_custom_call.1}
  #allocation0 [shape = 'u32[]', space=smem, size = 0x4, offset = 0x4, fixed_abs, tag = 'smem constant byte address 0x4 - core index']
  #allocation1 [shape = 'u32[144,128]{1,0:T(1,128)}', space=vmem, size = 0x12000, scoped, tag = 'internal scratch']
  #allocation2 [shape = 'f32[1]{0:T(128)S(6)}', space=smem, size = 0x200, scoped, tag = 'scoped memory for tpu_custom_call.1']
  #allocation3 [shape = 'f32[1]{0:T(128)S(6)}', space=smem, size = 0x200, scoped, tag = 'scoped memory for tpu_custom_call.1']
  %s0 = inlined_call_operand.<no memory space> [shape: f32[1], index: 0, kind: input, shape index: {}]
  %s1 = inlined_call_operand.<no memory space> [shape: f32[1], index: 1, kind: input, shape index: {}]
  %s2 = inlined_call_operand.hbm [shape: f32[64,128], index: 2, kind: input, shape index: {}]
  %s3 = inlined_call_operand.hbm [shape: f32[64,128], index: 3, kind: output, shape index: {}]
  %s4 = sld [smem:[#allocation0]]
  $region49: #{tpu_custom_call.1} parent=0
    _
  %s6 = ssub.s32 1, %s4
  %s7 = scalar_select 0, %s6, %s4
  %8 = sst [smem:[#allocation2]] %s0
  %9 = sst [smem:[#allocation3]] %s1
  $region1: #{tpu_custom_call.1} parent=0
    #allocation4 [shape = 'u8[32768]{0}', space=vmem, size = 0x8000, scoped, tag = 'input window, operand 2']
    #allocation5 [shape = 's32[2]{0}', space=sflag, size = 0x8, scoped, tag = 'scoped memory for tpu_custom_call.1']
    #allocation6 [shape = 's32[2]{0}', space=sflag, size = 0x8, scoped, tag = 'scoped memory for tpu_custom_call.1']
    #allocation7 [shape = 'u8[32768]{0}', space=vmem, size = 0x8000, scoped, tag = 'output window, operand 0']
    %10 = vsyncpa [#allocation5], 0
    %s11 = scalar_lea.sflag [#allocation5], 1
    %12 = vsyncpa %s11, 0
    %13 = vsyncpa [#allocation6], 0
    %s14 = scalar_lea.sflag [#allocation6], 1
    %15 = vsyncpa %s14, 0
    loop: start=0, step=1, limit=4
    $region2: #{tpu_custom_call.1} parent=1 // loop_pre_header
      _
    $region3: #{tpu_custom_call.1} parent=1 // loop_header
      %s17 = sphi 0, %s21
      %p18 = scmp.ge.s32.totalorder %s17, 4
      %s25 = sphi 0, %s25
      %s27 = sphi 0, %s25
      %s28 = sphi 0, %s27
      %s42 = sphi 0, %s28
      %s46 = sphi 0, %s46
      %s48 = sphi 0, %s46
      %s49 = sphi 0, %s48
      %s63 = sphi 0, %s49
      %s69 = sphi 0, %s71
      %s72 = sphi 0, %s69
      %s73 = sphi 0, %s72
      %s89 = sphi 0, %s73
      %s95 = sphi 0, %s97
      %s98 = sphi 0, %s95
      %s99 = sphi 0, %s98
      %s115 = sphi 0, %s99
    $region4: #{tpu_custom_call.1} parent=1 // loop_header_branch
      %20 = sbr.rel (%p18) target = $region8
    $region5: #{tpu_custom_call.1} parent=1 // loop_body
      %s22 = ssub.s32 %s17, 1
      %s23 = ssub.s32 %s17, 2
      %s24 = sadd.s32 %s17, 1
      %s26 = sadd.s32 %s25, 1
      %p29 = scmp.eq.s32.totalorder %s17, 1
      %p30 = scmp.ne.s32.totalorder %s25, %s27
      %p31 = scmp.eq.s32.totalorder %s17, 0
      %p32 = por %p30, %p31
      %p33 = scmp.ne.s32.totalorder %s25, %s27
      %p34 = scmp.eq.s32.totalorder %s22, 1
      %p35 = por %p33, %p34
      %p36 = scmp.ne.s32.totalorder %s27, %s28
      %p37 = scmp.eq.s32.totalorder %s22, 0
      %p38 = por %p36, %p37
      %p39 = scmp.ne.s32.totalorder %s27, %s28
      %p40 = scmp.eq.s32.totalorder %s23, 1
      %p41 = por %p39, %p40
      %p43 = scmp.ne.s32.totalorder %s28, %s42
      %p44 = scmp.eq.s32.totalorder %s23, 0
      %p45 = por %p43, %p44
      %s47 = sadd.s32 %s46, 1
      %p50 = scmp.eq.s32.totalorder %s17, 1
      %p51 = scmp.ne.s32.totalorder %s46, %s48
      %p52 = scmp.eq.s32.totalorder %s17, 0
      %p53 = por %p51, %p52
      %p54 = scmp.ne.s32.totalorder %s46, %s48
      %p55 = scmp.eq.s32.totalorder %s22, 1
      %p56 = por %p54, %p55
      %p57 = scmp.ne.s32.totalorder %s48, %s49
      %p58 = scmp.eq.s32.totalorder %s22, 0
      %p59 = por %p57, %p58
      %p60 = scmp.ne.s32.totalorder %s48, %s49
      %p61 = scmp.eq.s32.totalorder %s23, 1
      %p62 = por %p60, %p61
      %p64 = scmp.ne.s32.totalorder %s49, %s63
      %p65 = scmp.eq.s32.totalorder %s23, 0
      %p66 = por %p64, %p65
      %s67 = ssub.s32 %s17, %s24
      %p68 = scmp.eq.s32.totalorder %s67, 0
      %s70 = sadd.s32 %s69, 1
      %s71 = scalar_select %p68, %s69, %s70
      %p74 = pneg %p68
      %p75 = scmp.eq.s32.totalorder %s17, 1
      %p76 = por %p74, %p75
      %p77 = scmp.ne.s32.totalorder %s69, %s72
      %p78 = scmp.eq.s32.totalorder %s17, 0
      %p79 = por %p77, %p78
      %p80 = scmp.ne.s32.totalorder %s69, %s72
      %p81 = scmp.eq.s32.totalorder %s22, 1
      %p82 = por %p80, %p81
      %p83 = scmp.ne.s32.totalorder %s72, %s73
      %p84 = scmp.eq.s32.totalorder %s22, 0
      %p85 = por %p83, %p84
      %p86 = scmp.ne.s32.totalorder %s72, %s73
      %p87 = scmp.eq.s32.totalorder %s23, 1
      %p88 = por %p86, %p87
      %p90 = scmp.ne.s32.totalorder %s73, %s89
      %p91 = scmp.eq.s32.totalorder %s23, 0
      %p92 = por %p90, %p91
      %s93 = ssub.s32 %s17, %s24
      %p94 = scmp.eq.s32.totalorder %s93, 0
      %s96 = sadd.s32 %s95, 1
      %s97 = scalar_select %p94, %s95, %s96
      %p100 = pneg %p94
      %p101 = scmp.eq.s32.totalorder %s17, 1
      %p102 = por %p100, %p101
      %p103 = scmp.ne.s32.totalorder %s95, %s98
      %p104 = scmp.eq.s32.totalorder %s17, 0
      %p105 = por %p103, %p104
      %p106 = scmp.ne.s32.totalorder %s95, %s98
      %p107 = scmp.eq.s32.totalorder %s22, 1
      %p108 = por %p106, %p107
      %p109 = scmp.ne.s32.totalorder %s98, %s99
      %p110 = scmp.eq.s32.totalorder %s22, 0
      %p111 = por %p109, %p110
      %p112 = scmp.ne.s32.totalorder %s98, %s99
      %p113 = scmp.eq.s32.totalorder %s23, 1
      %p114 = por %p112, %p113
      %p116 = scmp.ne.s32.totalorder %s99, %s115
      %p117 = scmp.eq.s32.totalorder %s23, 0
      %p118 = por %p116, %p117
      %p119 = scmp.le.s32.totalorder 1, %s17
      %p120 = scmp.lt.s32.totalorder %s17, 3
      %p121 = pnand %p119, %p120
      %p122 = pneg %p121
      // Predicated region
      $region9: #{tpu_custom_call.1} parent=5 // pred_check
        _
      $region10: #{tpu_custom_call.1} parent=5 // pred_check_branch
        %124 = sbr.rel (%p121) target = $region12
      $region11: #{tpu_custom_call.1} parent=5 // pred_region
        %s125 = ssub.s32 %s17, 1
        // Predicated region
        $region13: #{tpu_custom_call.1} parent=11 // pred_check
          %p126 = pneg %p38
        $region14: #{tpu_custom_call.1} parent=11 // pred_check_branch
          %128 = sbr.rel (%p126) target = $region16
        $region15: #{tpu_custom_call.1} parent=11 // pred_region
          _
        $region16: #{tpu_custom_call.1} parent=11 // pred_fallthru
          _
        // Predicated region
        $region17: #{tpu_custom_call.1} parent=11 // pred_check
          %p129 = pneg %p59
        $region18: #{tpu_custom_call.1} parent=11 // pred_check_branch
          %131 = sbr.rel (%p129) target = $region20
        $region19: #{tpu_custom_call.1} parent=11 // pred_region
          _
        $region20: #{tpu_custom_call.1} parent=11 // pred_fallthru
          _
      $region12: #{tpu_custom_call.1} parent=5 // pred_fallthru
        _
      %p132 = scmp.lt.s32.totalorder %s17, 2
      // Predicated region
      $region21: #{tpu_custom_call.1} parent=5 // pred_check
        %p133 = pneg %p132
      $region22: #{tpu_custom_call.1} parent=5 // pred_check_branch
        %135 = sbr.rel (%p133) target = $region24
      $region23: #{tpu_custom_call.1} parent=5 // pred_region
        // Predicated region
        $region25: #{tpu_custom_call.1} parent=23 // pred_check
          %p136 = pneg %p79
        $region26: #{tpu_custom_call.1} parent=23 // pred_check_branch
          %138 = sbr.rel (%p136) target = $region28
        $region27: #{tpu_custom_call.1} parent=23 // pred_region
          %s139 = sand.u32 %s69, 1
          %s140 = scalar_lea.sflag [#allocation5], %s139
          %s141 = sand.u32 %s69, 1
          %s142 = smul.addr %s141, 32
          %s143 = scalar_lea.vmem [#allocation4], %s142
          %s144 = smul.u32 4, %s17
          %s146 = ssub.s32 512, 512
          %147 = vsyncadd %s140, %s146
          %s148 = smul.addr %s144, 128
          %s149 = scalar_lea.hbm %s2, %s148
          %s150 = sshll.u32 %s143, 4
          %s151 = int_to_ptr.vmem [resolvable:$true] %s150
          %156 = dma.hbm_to_vmem [thread:$0]  %s149, 512, %s151, %s140, 128, 128, 8
        $region28: #{tpu_custom_call.1} parent=23 // pred_fallthru
          _
      $region24: #{tpu_custom_call.1} parent=5 // pred_fallthru
        _
      %p157 = scmp.le.s32.totalorder 1, %s17
      %p158 = scmp.lt.s32.totalorder %s17, 3
      %p159 = pnand %p157, %p158
      %p160 = pneg %p159
      // Predicated region
      $region29: #{tpu_custom_call.1} parent=5 // pred_check
        _
      $region30: #{tpu_custom_call.1} parent=5 // pred_check_branch
        %162 = sbr.rel (%p159) target = $region32
      $region31: #{tpu_custom_call.1} parent=5 // pred_region
        %s163 = ssub.s32 %s17, 1
        %s164 = sand.u32 %s72, 1
        %s165 = scalar_lea.sflag [#allocation5], %s164
        %s166 = sand.u32 %s72, 1
        %s167 = smul.addr %s166, 32
        %s168 = scalar_lea.vmem [#allocation4], %s167
        // Predicated region
        $region33: #{tpu_custom_call.1} parent=31 // pred_check
          %p169 = pneg %p85
        $region34: #{tpu_custom_call.1} parent=31 // pred_check_branch
          %171 = sbr.rel (%p169) target = $region36
        $region35: #{tpu_custom_call.1} parent=31 // pred_region
          %172 = dma.done %s165, 512
        $region36: #{tpu_custom_call.1} parent=31 // pred_fallthru
          _
        %p173 = pneg %p38
        %p174 = pneg %p35
        %p175 = pneg %p59
        %p176 = pneg %p56
        %s177 = sand.u32 %s72, 1
        %s178 = scalar_lea.sflag [#allocation5], %s177
        %s179 = sand.u32 %s72, 1
        %s180 = smul.addr %s179, 32
        %s181 = scalar_lea.vmem [#allocation4], %s180
        %p182 = pneg %p85
        %p183 = pneg %p82
        %p184 = pneg %p111
        %p185 = pneg %p108
        %s186 = sand.u32 %s98, 1
        %s187 = scalar_lea.sflag [#allocation6], %s186
        %s188 = sand.u32 %s98, 1
        %s189 = smul.addr %s188, 32
        %s190 = scalar_lea.vmem [#allocation7], %s189
        %s191 = smul.u32 4, %s22
        %s192 = smul.u32 4, %s22
        %s193 = sld [smem:[#allocation2]]
        %s194 = sld [smem:[#allocation3]]
        %v195 = vld [vmem:[%s168] sm:$0xff]
        %v196 = vld [vmem:[%s168 + $0x8] sm:$0xff]
        %v197 = vld [vmem:[%s168 + $0x10] sm:$0xff]
        %v198 = vld [vmem:[%s168 + $0x18] sm:$0xff]
        %v199 = vstv %s193
        %v200 = vmul.f32 %v195, %v199
        %v201 = vmul.f32 %v196, %v199
        %v202 = vmul.f32 %v197, %v199
        %v203 = vmul.f32 %v198, %v199
        %v204 = vstv %s194
        %v205 = vadd.f32 %v200, %v204
        %v206 = vadd.f32 %v201, %v204
        %v207 = vadd.f32 %v202, %v204
        %v208 = vadd.f32 %v203, %v204
        %209 = vst [vmem:[%s190] sm:$0xff] %v205
        %210 = vst [vmem:[%s190 + $0x8] sm:$0xff] %v206
        %211 = vst [vmem:[%s190 + $0x10] sm:$0xff] %v207
        %212 = vst [vmem:[%s190 + $0x18] sm:$0xff] %v208
        %s213 = sand.u32 %s98, 1
        %s214 = scalar_lea.sflag [#allocation6], %s213
        %s215 = sand.u32 %s98, 1
        %s216 = smul.addr %s215, 32
        %s217 = scalar_lea.vmem [#allocation7], %s216
        // Predicated region
        $region37: #{tpu_custom_call.1} parent=31 // pred_check
          %p218 = pneg %p108
        $region38: #{tpu_custom_call.1} parent=31 // pred_check_branch
          %220 = sbr.rel (%p218) target = $region40
        $region39: #{tpu_custom_call.1} parent=31 // pred_region
          %s221 = smul.u32 4, %s22
          %s223 = ssub.s32 512, 512
          %224 = vsyncadd %s214, %s223
          %s225 = smul.addr %s221, 128
          %s226 = scalar_lea.hbm %s3, %s225
          %s227 = sshll.u32 %s217, 4
          %s228 = int_to_ptr.vmem [resolvable:$true] %s227
          %233 = dma.vmem_to_hbm [thread:$0]  %s228, 512, %s226, %s214, 128, 128, 8
        $region40: #{tpu_custom_call.1} parent=31 // pred_fallthru
          _
      $region32: #{tpu_custom_call.1} parent=5 // pred_fallthru
        _
      %p234 = scmp.le.s32.totalorder 2, %s17
      // Predicated region
      $region41: #{tpu_custom_call.1} parent=5 // pred_check
        %p235 = pneg %p234
      $region42: #{tpu_custom_call.1} parent=5 // pred_check_branch
        %237 = sbr.rel (%p235) target = $region44
      $region43: #{tpu_custom_call.1} parent=5 // pred_region
        %s238 = ssub.s32 %s17, 2
        // Predicated region
        $region45: #{tpu_custom_call.1} parent=43 // pred_check
          %p239 = pneg %p114
        $region46: #{tpu_custom_call.1} parent=43 // pred_check_branch
          %241 = sbr.rel (%p239) target = $region48
        $region47: #{tpu_custom_call.1} parent=43 // pred_region
          %s242 = sand.u32 %s99, 1
          %s243 = scalar_lea.sflag [#allocation6], %s242
          %s244 = sand.u32 %s99, 1
          %s245 = smul.addr %s244, 32
          %s246 = scalar_lea.vmem [#allocation7], %s245
          %247 = dma.done %s243, 512
        $region48: #{tpu_custom_call.1} parent=43 // pred_fallthru
          _
      $region44: #{tpu_custom_call.1} parent=5 // pred_fallthru
        _
    $region6: #{tpu_custom_call.1} parent=1 // loop_footer
      %s21 = sadd.s32 1, %s17
    $region7: #{tpu_custom_call.1} parent=1 // loop_footer_branch
      %16 = sbr.rel target = $region3
    $region8: #{tpu_custom_call.1} parent=1 // loop_exit
      _
    %248 = vsyncpa [#allocation5], 1
    %s249 = scalar_lea.sflag [#allocation5], 1
    %250 = vsyncpa %s249, 1
    %251 = vsyncpa [#allocation6], 1
    %s252 = scalar_lea.sflag [#allocation6], 1
    %253 = vsyncpa %s252, 1

</llo_original>
